<compile_context>
chip_gen: v7x
topology: tpu7x:2x2x1
jax: 0.10.0
libtpu: 0.0.40
codegen_flags: <defaults>
</compile_context>

<pallas_src>
import math
import functools

import jax
import jax.numpy as jnp
from jax.experimental import pallas as pl
from jax.experimental.pallas import tpu as pltpu

_LANE = 128      # lane width of a vreg (last dim)
_SUBLANE = 8     # sublane count of a vreg (second-to-last dim)


def _round_up(x, m):
    return ((x + m - 1) // m) * m


def _pad2d(a, rows, cols):
    r, c = a.shape
    return jnp.pad(a, ((0, rows - r), (0, cols - c)))


def _device_profile():
    """Returns (usable VMEM budget bytes, batch-tile hard cap, tensorcores/device)."""
    try:
        kind = jax.devices()[0].device_kind.lower()
    except Exception:
        kind = ""
    if "v7" in kind:                        # 64 MiB VMEM per TC, 2 TCs / chip
        return 48 << 20, 1024, 2
    if ("v5" in kind) or ("v6" in kind):    # 128 MiB VMEM, single TC
        return 96 << 20, 2048, 1
    return 48 << 20, 1024, 1                # conservative default


def _make_encoder_kernel(n_hidden, compute_dtype):
    """Fused kernel: n_hidden x (Linear+ReLU), fused [mu|logvar] head."""

    def kernel(x_ref, *refs):
        n_param = 2 * (n_hidden + 1)         # (W, b) per hidden layer + fused head
        param_refs = refs[:n_param]
        out_ref = refs[n_param]

        h = x_ref[...]                       # [bt, d0_pad] f32

        # hidden Linear + ReLU stack (unrolled at trace time)
        for i in range(n_hidden):
            w = param_refs[2 * i][...]       # compute_dtype (f32 or bf16)
            b = param_refs[2 * i + 1][...]   # f32
            h = jnp.dot(h.astype(compute_dtype), w,
                        preferred_element_type=jnp.float32) + b
            h = jnp.maximum(h, 0.0)

        # fused head: one matmul producing [bt, 2*emb_pad] = [mu | logvar]
        w_head = param_refs[2 * n_hidden][...]
        b_head = param_refs[2 * n_hidden + 1][...]
        out_ref[...] = jnp.dot(h.astype(compute_dtype), w_head,
                               preferred_element_type=jnp.float32) + b_head

    return kernel


def pack_encoder_params(params, *, data_dim, embedding_dim,
                        matmul_dtype=jnp.float32):
    """One-time packing: zero-pad weights to TPU-friendly shapes, fuse fc1/fc2.

    Hoisted out of the per-call hot path so the forward never re-pads/concats
    weights in HBM.  Hidden/embedding dims are padded to 128 lanes; the input
    feature dim only to a sublane multiple (8).  Weights take `matmul_dtype`
    (pass jnp.bfloat16 on v6e/v7x for native-rate MXU + halved weight DMA);
    biases stay f32.
    """
    n_hidden = len(params) // 2 - 2
    dims = [data_dim] + [params[2 * i].shape[1] for i in range(n_hidden)]
    dims_pad = [_round_up(data_dim, _SUBLANE)] + \
               [_round_up(d, _LANE) for d in dims[1:]]
    emb_pad = _round_up(embedding_dim, _LANE)

    packed = []
    for i in range(n_hidden):
        w, b = params[2 * i], params[2 * i + 1]
        packed.append(_pad2d(w, dims_pad[i], dims_pad[i + 1]).astype(matmul_dtype))
        packed.append(_pad2d(b, 1, dims_pad[i + 1]).astype(jnp.float32))

    hdim_pad = dims_pad[-1]
    w_mu, b_mu = params[2 * n_hidden], params[2 * n_hidden + 1]
    w_lv, b_lv = params[2 * n_hidden + 2], params[2 * n_hidden + 3]
    w_head = jnp.concatenate([_pad2d(w_mu, hdim_pad, emb_pad),
                              _pad2d(w_lv, hdim_pad, emb_pad)],
                             axis=1).astype(matmul_dtype)
    b_head = jnp.concatenate([_pad2d(b_mu, 1, emb_pad),
                              _pad2d(b_lv, 1, emb_pad)],
                             axis=1).astype(jnp.float32)
    packed += [w_head, b_head]
    return packed


def encoder_forward(x, packed, *, embedding_dim, batch_tile=None,
                    single_buffer_params=True):
    """Run the fused Encoder kernel on pre-packed params.

    x:      [B, data_dim] float32
    packed: output of pack_encoder_params
    returns (mu, std, logvar), each [B, embedding_dim] float32.
    """
    B, data_dim = x.shape
    n_hidden = len(packed) // 2 - 1
    d0_pad = packed[0].shape[0]              # input features, sublane-aligned
    emb_pad = packed[-1].shape[1] // 2       # 128-aligned embedding width
    out_width = 2 * emb_pad                  # packed [mu | logvar]
    compute_dtype = packed[0].dtype

    # ---- VMEM-aware batch tile sizing (per-generation budget & caps) ----
    vmem_budget, hard_cap, n_tc = _device_profile()
    buf_factor = 1 if single_buffer_params else 2
    param_bytes = sum(p.size * p.dtype.itemsize for p in packed)
    live_cols = max(packed[2 * i].shape[1] for i in range(n_hidden + 1))
    # double-buffered x tile + double-buffered out tile + live activations
    bytes_per_row = 4 * (2 * d0_pad + 2 * out_width + 2 * live_cols)
    avail = max(vmem_budget - buf_factor * param_bytes - (2 << 20), 1 << 20)
    max_rows = max(_SUBLANE, (avail // bytes_per_row) // _SUBLANE * _SUBLANE)

    if batch_tile is None:
        rows = _round_up(B, _SUBLANE)
        if n_tc > 1 and rows >= 2 * _SUBLANE:
            # guarantee >= n_tc grid steps so "parallel" shards across both TCs
            rows = _round_up(-(-rows // n_tc), _SUBLANE)
        batch_tile = max(_SUBLANE, min(rows, max_rows, hard_cap))
    else:
        batch_tile = max(_SUBLANE, _round_up(batch_tile, _SUBLANE))

    B_pad = _round_up(max(B, batch_tile), batch_tile)
    grid = (B_pad // batch_tile,)

    # scoped-VMEM limit: only raised above the conservative 16 MiB default
    # (v5e) when the estimated footprint actually needs it.
    est_need = buf_factor * param_bytes + batch_tile * bytes_per_row + (2 << 20)
    vmem_limit = None
    if est_need > (16 << 20):
        vmem_limit = int(min(max(est_need * 5 // 4, 32 << 20), vmem_budget))

    # ---- pad only the batch dim (and features to a sublane multiple) ----
    # No 128-lane inflation of x: with data_dim already a multiple of 8 this
    # pad is a no-op and no activation copy is materialized.
    x_pad = jnp.pad(x.astype(jnp.float32),
                    ((0, B_pad - B), (0, d0_pad - data_dim)))

    # ---- specs ----
    if single_buffer_params:
        def _pspec(shape):
            # grid-invariant parameter block, fetched once -> single buffer
            return pl.BlockSpec(shape, lambda i: (0, 0),
                                pipeline_mode=pl.Buffered(1))
    else:
        def _pspec(shape):
            return pl.BlockSpec(shape, lambda i: (0, 0))

    in_specs = [pl.BlockSpec((batch_tile, d0_pad), lambda i: (i, 0))]
    in_specs += [_pspec(p.shape) for p in packed]
    out_spec = pl.BlockSpec((batch_tile, out_width), lambda i: (i, 0))
    out_shape = jax.ShapeDtypeStruct((B_pad, out_width), jnp.float32)

    out = pl.pallas_call(
        _make_encoder_kernel(n_hidden, compute_dtype),
        grid=grid,
        in_specs=in_specs,
        out_specs=out_spec,
        out_shape=out_shape,
        compiler_params=pltpu.CompilerParams(
            dimension_semantics=("parallel",),
            vmem_limit_bytes=vmem_limit),
    )(x_pad, *packed)

    mu = out[:B, :embedding_dim]
    logvar = out[:B, emb_pad:emb_pad + embedding_dim]
    # std computed outside the kernel on the already-sliced logvar (identical
    # formula to torch; drops a third of the lane-padded HBM writeback).
    std = jnp.exp(0.5 * logvar)
    return mu, std, logvar


def init_encoder_params(key, data_dim, compress_dims, embedding_dim):
    """Deterministic init mimicking torch.nn.Linear (uniform +/- 1/sqrt(fan_in)).

    Weights are stored as [in_dim, out_dim]; biases as [1, out_dim].
    """
    dims = [data_dim] + list(compress_dims)
    layer_dims = []
    for i in range(len(compress_dims)):
        layer_dims.append((dims[i], dims[i + 1]))           # hidden layers
    layer_dims.append((dims[-1], embedding_dim))            # fc1 (mu)
    layer_dims.append((dims[-1], embedding_dim))            # fc2 (logvar)

    params = []
    for (fan_in, fan_out) in layer_dims:
        key, kw, kb = jax.random.split(key, 3)
        bound = 1.0 / math.sqrt(fan_in)
        w = jax.random.uniform(kw, (fan_in, fan_out), jnp.float32, -bound, bound)
        b = jax.random.uniform(kb, (1, fan_out), jnp.float32, -bound, bound)
        params += [w, b]
    return params


def encoder_ref(x, params):
    """Plain-JAX reference for correctness checking."""
    n_hidden = len(params) // 2 - 2
    h = x
    for i in range(n_hidden):
        h = jnp.maximum(h @ params[2 * i] + params[2 * i + 1], 0.0)
    mu = h @ params[2 * n_hidden] + params[2 * n_hidden + 1]
    logvar = h @ params[2 * n_hidden + 2] + params[2 * n_hidden + 3]
    std = jnp.exp(0.5 * logvar)
    return mu, std, logvar


if __name__ == "__main__":
    # Small shapes consistent with the module's forward.
    batch = 16
    data_dim = 32
    compress_dims = (64, 32)
    embedding_dim = 16

    key = jax.random.PRNGKey(0)
    key, kx = jax.random.split(key)
    x = jax.random.normal(kx, (batch, data_dim), jnp.float32)
    params = init_encoder_params(key, data_dim, compress_dims, embedding_dim)

    mu_r, std_r, logvar_r = encoder_ref(x, params)

    # Packing is hoisted out of the per-call hot path: done once, eagerly.
    packed_f32 = pack_encoder_params(params, data_dim=data_dim,
                                     embedding_dim=embedding_dim,
                                     matmul_dtype=jnp.float32)

    fwd = jax.jit(functools.partial(encoder_forward, embedding_dim=embedding_dim))
    try:
        mu, std, logvar = fwd(x, packed_f32)
        jax.block_until_ready((mu, std, logvar))
    except Exception:
        # Fallback if single-buffered params (pl.Buffered(1)) are rejected by
        # the installed Pallas/Mosaic version.
        fwd = jax.jit(functools.partial(encoder_forward,
                                        embedding_dim=embedding_dim,
                                        single_buffer_params=False))
        mu, std, logvar = fwd(x, packed_f32)
        jax.block_until_ready((mu, std, logvar))

    assert mu.shape == (batch, embedding_dim)
    assert std.shape == (batch, embedding_dim)
    assert logvar.shape == (batch, embedding_dim)
    assert jnp.allclose(mu, mu_r, atol=1e-5, rtol=1e-5)
    assert jnp.allclose(logvar, logvar_r, atol=1e-5, rtol=1e-5)
    assert jnp.allclose(std, std_r, atol=1e-5, rtol=1e-5)

    # Optional fast path: bf16 MXU operands (native-rate matmul on v6e/v7x,
    # halved weight DMA), f32 accumulation, bias/ReLU/exp in f32.
    packed_bf16 = pack_encoder_params(params, data_dim=data_dim,
                                      embedding_dim=embedding_dim,
                                      matmul_dtype=jnp.bfloat16)
    mu_b, std_b, logvar_b = fwd(x, packed_bf16)
    jax.block_until_ready((mu_b, std_b, logvar_b))
    assert jnp.allclose(mu_b, mu_r, atol=5e-2, rtol=5e-2)
    assert jnp.allclose(std_b, std_r, atol=5e-2, rtol=5e-2)
    assert jnp.allclose(logvar_b, logvar_r, atol=5e-2, rtol=5e-2)

    print("KERNEL_OK")
</pallas_src>

<mosaic_0001>
module attributes {stable_mosaic.version = 11 : i64} {
  func.func @kernel(%arg0: i32, %arg1: memref<16x32xf32, #tpu.memory_space<vmem>>, %arg2: memref<32x128xf32, #tpu.memory_space<vmem>>, %arg3: memref<1x128xf32, #tpu.memory_space<vmem>>, %arg4: memref<128x128xf32, #tpu.memory_space<vmem>>, %arg5: memref<1x128xf32, #tpu.memory_space<vmem>>, %arg6: memref<128x256xf32, #tpu.memory_space<vmem>>, %arg7: memref<1x256xf32, #tpu.memory_space<vmem>>, %arg8: memref<16x256xf32, #tpu.memory_space<vmem>>) attributes {dimension_semantics = [#tpu.dimension_semantics<parallel>], iteration_bounds = array<i64: 1>, scalar_prefetch = 0 : i64, scratch_operands = 0 : i64, tpu.core_type = #tpu.core_type<tc>, window_params = [{transform_indices = @transform_0, window_bounds = array<i64: 16, 32>}, {pipeline_mode = #tpu.pipeline_mode<synchronous>, transform_indices = @transform_1, window_bounds = array<i64: 32, 128>}, {pipeline_mode = #tpu.pipeline_mode<synchronous>, transform_indices = @transform_2, window_bounds = array<i64: 1, 128>}, {pipeline_mode = #tpu.pipeline_mode<synchronous>, transform_indices = @transform_3, window_bounds = array<i64: 128, 128>}, {pipeline_mode = #tpu.pipeline_mode<synchronous>, transform_indices = @transform_4, window_bounds = array<i64: 1, 128>}, {pipeline_mode = #tpu.pipeline_mode<synchronous>, transform_indices = @transform_5, window_bounds = array<i64: 128, 256>}, {pipeline_mode = #tpu.pipeline_mode<synchronous>, transform_indices = @transform_6, window_bounds = array<i64: 1, 256>}, {transform_indices = @transform_7, window_bounds = array<i64: 16, 256>}]} {
    %c0 = arith.constant 0 : index
    %c0_0 = arith.constant 0 : index
    %0 = vector.load %arg1[%c0, %c0_0] : memref<16x32xf32, #tpu.memory_space<vmem>>, vector<16x32xf32>
    %c0_1 = arith.constant 0 : index
    %c0_2 = arith.constant 0 : index
    %1 = vector.load %arg2[%c0_1, %c0_2] : memref<32x128xf32, #tpu.memory_space<vmem>>, vector<32x128xf32>
    %c0_3 = arith.constant 0 : index
    %c0_4 = arith.constant 0 : index
    %2 = vector.load %arg3[%c0_3, %c0_4] : memref<1x128xf32, #tpu.memory_space<vmem>>, vector<1x128xf32>
    %cst = arith.constant dense<0.000000e+00> : vector<16x128xf32>
    %3 = tpu.matmul %0, %1, %cst {dimension_numbers = #tpu.dot_dimension_numbers<[1], [0], [0], [1], [0, 0, 1, 1], [], []>} : vector<16x32xf32>, vector<32x128xf32>, vector<16x128xf32> -> vector<16x128xf32>
    %4 = vector.broadcast %2 : vector<1x128xf32> to vector<16x128xf32>
    %5 = arith.addf %3, %4 : vector<16x128xf32>
    %cst_5 = arith.constant 0.000000e+00 : f32
    %6 = vector.broadcast %cst_5 : f32 to vector<16x128xf32>
    %7 = arith.maximumf %5, %6 : vector<16x128xf32>
    %c0_6 = arith.constant 0 : index
    %c0_7 = arith.constant 0 : index
    %8 = vector.load %arg4[%c0_6, %c0_7] : memref<128x128xf32, #tpu.memory_space<vmem>>, vector<128x128xf32>
    %c0_8 = arith.constant 0 : index
    %c0_9 = arith.constant 0 : index
    %9 = vector.load %arg5[%c0_8, %c0_9] : memref<1x128xf32, #tpu.memory_space<vmem>>, vector<1x128xf32>
    %cst_10 = arith.constant dense<0.000000e+00> : vector<16x128xf32>
    %10 = tpu.matmul %7, %8, %cst_10 {dimension_numbers = #tpu.dot_dimension_numbers<[1], [0], [0], [1], [0, 0, 1, 1], [], []>} : vector<16x128xf32>, vector<128x128xf32>, vector<16x128xf32> -> vector<16x128xf32>
    %11 = vector.broadcast %9 : vector<1x128xf32> to vector<16x128xf32>
    %12 = arith.addf %10, %11 : vector<16x128xf32>
    %cst_11 = arith.constant 0.000000e+00 : f32
    %13 = vector.broadcast %cst_11 : f32 to vector<16x128xf32>
    %14 = arith.maximumf %12, %13 : vector<16x128xf32>
    %c0_12 = arith.constant 0 : index
    %c0_13 = arith.constant 0 : index
    %15 = vector.load %arg6[%c0_12, %c0_13] : memref<128x256xf32, #tpu.memory_space<vmem>>, vector<128x256xf32>
    %c0_14 = arith.constant 0 : index
    %c0_15 = arith.constant 0 : index
    %16 = vector.load %arg7[%c0_14, %c0_15] : memref<1x256xf32, #tpu.memory_space<vmem>>, vector<1x256xf32>
    %cst_16 = arith.constant dense<0.000000e+00> : vector<16x256xf32>
    %17 = tpu.matmul %14, %15, %cst_16 {dimension_numbers = #tpu.dot_dimension_numbers<[1], [0], [0], [1], [0, 0, 1, 1], [], []>} : vector<16x128xf32>, vector<128x256xf32>, vector<16x256xf32> -> vector<16x256xf32>
    %18 = vector.broadcast %16 : vector<1x256xf32> to vector<16x256xf32>
    %19 = arith.addf %17, %18 : vector<16x256xf32>
    %c0_17 = arith.constant 0 : index
    %c0_18 = arith.constant 0 : index
    %20 = vector.load %arg8[%c0_17, %c0_18] : memref<16x256xf32, #tpu.memory_space<vmem>>, vector<16x256xf32>
    tpu.vector_store %arg8[%c0_17, %c0_18], %19 {strides = array<i32>} : memref<16x256xf32, #tpu.memory_space<vmem>>, vector<16x256xf32>,
    return
  }
  func.func @transform_0(%arg0: i32) -> (i32, i32) {
    %c0_i32 = arith.constant 0 : i32
    %c0_i32_0 = arith.constant 0 : i32
    return %arg0, %c0_i32 : i32, i32
  }
  func.func @transform_1(%arg0: i32) -> (i32, i32) {
    %c0_i32 = arith.constant 0 : i32
    %c0_i32_0 = arith.constant 0 : i32
    %c0_i32_1 = arith.constant 0 : i32
    return %c0_i32, %c0_i32_0 : i32, i32
  }
  func.func @transform_2(%arg0: i32) -> (i32, i32) {
    %c0_i32 = arith.constant 0 : i32
    %c0_i32_0 = arith.constant 0 : i32
    %c0_i32_1 = arith.constant 0 : i32
    return %c0_i32, %c0_i32_0 : i32, i32
  }
  func.func @transform_3(%arg0: i32) -> (i32, i32) {
    %c0_i32 = arith.constant 0 : i32
    %c0_i32_0 = arith.constant 0 : i32
    %c0_i32_1 = arith.constant 0 : i32
    return %c0_i32, %c0_i32_0 : i32, i32
  }
  func.func @transform_4(%arg0: i32) -> (i32, i32) {
    %c0_i32 = arith.constant 0 : i32
    %c0_i32_0 = arith.constant 0 : i32
    %c0_i32_1 = arith.constant 0 : i32
    return %c0_i32, %c0_i32_0 : i32, i32
  }
  func.func @transform_5(%arg0: i32) -> (i32, i32) {
    %c0_i32 = arith.constant 0 : i32
    %c0_i32_0 = arith.constant 0 : i32
    %c0_i32_1 = arith.constant 0 : i32
    return %c0_i32, %c0_i32_0 : i32, i32
  }
  func.func @transform_6(%arg0: i32) -> (i32, i32) {
    %c0_i32 = arith.constant 0 : i32
    %c0_i32_0 = arith.constant 0 : i32
    %c0_i32_1 = arith.constant 0 : i32
    return %c0_i32, %c0_i32_0 : i32, i32
  }
  func.func @transform_7(%arg0: i32) -> (i32, i32) {
    %c0_i32 = arith.constant 0 : i32
    %c0_i32_0 = arith.constant 0 : i32
    return %arg0, %c0_i32 : i32, i32
  }
}

module attributes {stable_mosaic.version = 11 : i64} {
  func.func @kernel(%arg0: i32, %arg1: memref<16x32xf32, #tpu.memory_space<vmem>>, %arg2: memref<32x128xf32, #tpu.memory_space<vmem>>, %arg3: memref<1x128xf32, #tpu.memory_space<vmem>>, %arg4: memref<128x128xf32, #tpu.memory_space<vmem>>, %arg5: memref<1x128xf32, #tpu.memory_space<vmem>>, %arg6: memref<128x256xf32, #tpu.memory_space<vmem>>, %arg7: memref<1x256xf32, #tpu.memory_space<vmem>>, %arg8: memref<16x256xf32, #tpu.memory_space<vmem>>) attributes {dimension_semantics = [#tpu.dimension_semantics<parallel>], iteration_bounds = array<i64: 1>, scalar_prefetch = 0 : i64, scratch_operands = 0 : i64, tpu.core_type = #tpu.core_type<tc>, window_params = [{transform_indices = @transform_0, window_bounds = array<i64: 16, 32>}, {pipeline_mode = #tpu.pipeline_mode<synchronous>, transform_indices = @transform_1, window_bounds = array<i64: 32, 128>}, {pipeline_mode = #tpu.pipeline_mode<synchronous>, transform_indices = @transform_2, window_bounds = array<i64: 1, 128>}, {pipeline_mode = #tpu.pipeline_mode<synchronous>, transform_indices = @transform_3, window_bounds = array<i64: 128, 128>}, {pipeline_mode = #tpu.pipeline_mode<synchronous>, transform_indices = @transform_4, window_bounds = array<i64: 1, 128>}, {pipeline_mode = #tpu.pipeline_mode<synchronous>, transform_indices = @transform_5, window_bounds = array<i64: 128, 256>}, {pipeline_mode = #tpu.pipeline_mode<synchronous>, transform_indices = @transform_6, window_bounds = array<i64: 1, 256>}, {transform_indices = @transform_7, window_bounds = array<i64: 16, 256>}]} {
    %c0 = arith.constant 0 : index
    %c0_0 = arith.constant 0 : index
    %0 = vector.load %arg1[%c0, %c0_0] : memref<16x32xf32, #tpu.memory_space<vmem>>, vector<16x32xf32>
    %c0_1 = arith.constant 0 : index
    %c0_2 = arith.constant 0 : index
    %1 = vector.load %arg2[%c0_1, %c0_2] : memref<32x128xf32, #tpu.memory_space<vmem>>, vector<32x128xf32>
    %c0_3 = arith.constant 0 : index
    %c0_4 = arith.constant 0 : index
    %2 = vector.load %arg3[%c0_3, %c0_4] : memref<1x128xf32, #tpu.memory_space<vmem>>, vector<1x128xf32>
    %cst = arith.constant dense<0.000000e+00> : vector<16x128xf32>
    %3 = tpu.matmul %0, %1, %cst {dimension_numbers = #tpu.dot_dimension_numbers<[1], [0], [0], [1], [0, 0, 1, 1], [], []>} : vector<16x32xf32>, vector<32x128xf32>, vector<16x128xf32> -> vector<16x128xf32>
    %4 = vector.broadcast %2 : vector<1x128xf32> to vector<16x128xf32>
    %5 = arith.addf %3, %4 : vector<16x128xf32>
    %cst_5 = arith.constant 0.000000e+00 : f32
    %6 = vector.broadcast %cst_5 : f32 to vector<16x128xf32>
    %7 = arith.maximumf %5, %6 : vector<16x128xf32>
    %c0_6 = arith.constant 0 : index
    %c0_7 = arith.constant 0 : index
    %8 = vector.load %arg4[%c0_6, %c0_7] : memref<128x128xf32, #tpu.memory_space<vmem>>, vector<128x128xf32>
    %c0_8 = arith.constant 0 : index
    %c0_9 = arith.constant 0 : index
    %9 = vector.load %arg5[%c0_8, %c0_9] : memref<1x128xf32, #tpu.memory_space<vmem>>, vector<1x128xf32>
    %cst_10 = arith.constant dense<0.000000e+00> : vector<16x128xf32>
    %10 = tpu.matmul %7, %8, %cst_10 {dimension_numbers = #tpu.dot_dimension_numbers<[1], [0], [0], [1], [0, 0, 1, 1], [], []>} : vector<16x128xf32>, vector<128x128xf32>, vector<16x128xf32> -> vector<16x128xf32>
    %11 = vector.broadcast %9 : vector<1x128xf32> to vector<16x128xf32>
    %12 = arith.addf %10, %11 : vector<16x128xf32>
    %cst_11 = arith.constant 0.000000e+00 : f32
    %13 = vector.broadcast %cst_11 : f32 to vector<16x128xf32>
    %14 = arith.maximumf %12, %13 : vector<16x128xf32>
    %c0_12 = arith.constant 0 : index
    %c0_13 = arith.constant 0 : index
    %15 = vector.load %arg6[%c0_12, %c0_13] : memref<128x256xf32, #tpu.memory_space<vmem>>, vector<128x256xf32>
    %c0_14 = arith.constant 0 : index
    %c0_15 = arith.constant 0 : index
    %16 = vector.load %arg7[%c0_14, %c0_15] : memref<1x256xf32, #tpu.memory_space<vmem>>, vector<1x256xf32>
    %cst_16 = arith.constant dense<0.000000e+00> : vector<16x256xf32>
    %17 = tpu.matmul %14, %15, %cst_16 {dimension_numbers = #tpu.dot_dimension_numbers<[1], [0], [0], [1], [0, 0, 1, 1], [], []>} : vector<16x128xf32>, vector<128x256xf32>, vector<16x256xf32> -> vector<16x256xf32>
    %18 = vector.broadcast %16 : vector<1x256xf32> to vector<16x256xf32>
    %19 = arith.addf %17, %18 : vector<16x256xf32>
    %c0_17 = arith.constant 0 : index
    %c0_18 = arith.constant 0 : index
    %20 = vector.load %arg8[%c0_17, %c0_18] : memref<16x256xf32, #tpu.memory_space<vmem>>, vector<16x256xf32>
    tpu.vector_store %arg8[%c0_17, %c0_18], %19 {strides = array<i32>} : memref<16x256xf32, #tpu.memory_space<vmem>>, vector<16x256xf32>,
    return
  }
  func.func @transform_0(%arg0: i32) -> (i32, i32) {
    %c0_i32 = arith.constant 0 : i32
    %c0_i32_0 = arith.constant 0 : i32
    return %arg0, %c0_i32 : i32, i32
  }
  func.func @transform_1(%arg0: i32) -> (i32, i32) {
    %c0_i32 = arith.constant 0 : i32
    %c0_i32_0 = arith.constant 0 : i32
    %c0_i32_1 = arith.constant 0 : i32
    return %c0_i32, %c0_i32_0 : i32, i32
  }
  func.func @transform_2(%arg0: i32) -> (i32, i32) {
    %c0_i32 = arith.constant 0 : i32
    %c0_i32_0 = arith.constant 0 : i32
    %c0_i32_1 = arith.constant 0 : i32
    return %c0_i32, %c0_i32_0 : i32, i32
  }
  func.func @transform_3(%arg0: i32) -> (i32, i32) {
    %c0_i32 = arith.constant 0 : i32
    %c0_i32_0 = arith.constant 0 : i32
    %c0_i32_1 = arith.constant 0 : i32
    return %c0_i32, %c0_i32_0 : i32, i32
  }
  func.func @transform_4(%arg0: i32) -> (i32, i32) {
    %c0_i32 = arith.constant 0 : i32
    %c0_i32_0 = arith.constant 0 : i32
    %c0_i32_1 = arith.constant 0 : i32
    return %c0_i32, %c0_i32_0 : i32, i32
  }
  func.func @transform_5(%arg0: i32) -> (i32, i32) {
    %c0_i32 = arith.constant 0 : i32
    %c0_i32_0 = arith.constant 0 : i32
    %c0_i32_1 = arith.constant 0 : i32
    return %c0_i32, %c0_i32_0 : i32, i32
  }
  func.func @transform_6(%arg0: i32) -> (i32, i32) {
    %c0_i32 = arith.constant 0 : i32
    %c0_i32_0 = arith.constant 0 : i32
    %c0_i32_1 = arith.constant 0 : i32
    return %c0_i32, %c0_i32_0 : i32, i32
  }
  func.func @transform_7(%arg0: i32) -> (i32, i32) {
    %c0_i32 = arith.constant 0 : i32
    %c0_i32_0 = arith.constant 0 : i32
    return %arg0, %c0_i32 : i32, i32
  }
}

</mosaic_0001>

<llo_original>
// kernel: encoder_forward.1
$region0: #{encoder_forward.1}
  #allocation0 [shape = 'u32[]', space=smem, size = 0x4, offset = 0x4, fixed_abs, tag = 'smem constant byte address 0x4 - core index']
  #allocation1 [shape = 'u32[144,128]{1,0:T(1,128)}', space=vmem, size = 0x12000, scoped, tag = 'internal scratch']
  %s0 = inlined_call_operand.hbm [shape: f32[16,32], index: 0, kind: input, shape index: {}]
  %s1 = inlined_call_operand.hbm [shape: f32[32,128], index: 1, kind: input, shape index: {}]
  %s2 = inlined_call_operand.vmem [shape: f32[1,128], index: 2, kind: input, shape index: {}]
  %s3 = inlined_call_operand.hbm [shape: f32[128,128], index: 3, kind: input, shape index: {}]
  %s4 = inlined_call_operand.vmem [shape: f32[1,128], index: 4, kind: input, shape index: {}]
  %s5 = inlined_call_operand.hbm [shape: f32[128,256], index: 5, kind: input, shape index: {}]
  %s6 = inlined_call_operand.vmem [shape: f32[1,256], index: 6, kind: input, shape index: {}]
  %s7 = inlined_call_operand.vmem [shape: f32[16,256], index: 7, kind: output, shape index: {}]
  %s8 = sld [smem:[#allocation0]]
  $region54: #{encoder_forward.1} parent=0
    _
  %s10 = ssub.s32 1, %s8
  %s11 = scalar_select 0, %s10, %s8
  $region1: #{encoder_forward.1} parent=0
    #allocation2 [shape = 'u8[8192]{0}', space=vmem, size = 0x2000, scoped, tag = 'input window, operand 0, single buffered']
    #allocation3 [shape = 's32[1]{0}', space=sflag, size = 0x4, scoped, tag = 'scoped memory for encoder_forward.1']
    #allocation4 [shape = 'u8[16384]{0}', space=vmem, size = 0x4000, scoped, tag = 'input window, operand 1, single buffered']
    #allocation5 [shape = 's32[1]{0}', space=sflag, size = 0x4, scoped, tag = 'scoped memory for encoder_forward.1']
    #allocation6 [shape = 'u8[65536]{0}', space=vmem, size = 0x10000, scoped, tag = 'input window, operand 3, single buffered']
    #allocation7 [shape = 'u8[131072]{0}', space=vmem, size = 0x20000, scoped, tag = 'input window, operand 5, single buffered']
    #allocation8 [shape = 's32[1]{0}', space=sflag, size = 0x4, scoped, tag = 'scoped memory for encoder_forward.1']
    %12 = vsyncpa [#allocation3], 0
    %13 = vsyncpa [#allocation5], 0
    %14 = vsyncpa [#allocation8], 0
    // Predicated region
    $region2: #{encoder_forward.1} parent=1 // pred_check
      _
    $region3: #{encoder_forward.1} parent=1 // pred_check_branch
      %16 = sbr.rel (0) target = $region5
    $region4: #{encoder_forward.1} parent=1 // pred_region
      %s18 = ssub.s32 256, 256
      %19 = vsyncadd [#allocation3], %s18
      %s20 = sshll.u32 [#allocation2], 4
      %s21 = int_to_ptr.vmem [resolvable:$true] %s20
      %26 = dma.hbm_to_vmem [thread:$0]  %s0, 256, %s21, [#allocation3], 128, 128, 8
    $region5: #{encoder_forward.1} parent=1 // pred_fallthru
      _
    // Predicated region
    $region6: #{encoder_forward.1} parent=1 // pred_check
      _
    $region7: #{encoder_forward.1} parent=1 // pred_check_branch
      %28 = sbr.rel (0) target = $region9
    $region8: #{encoder_forward.1} parent=1 // pred_region
      %s30 = ssub.s32 512, 512
      %31 = vsyncadd [#allocation5], %s30
      %s32 = sshll.u32 [#allocation4], 4
      %s33 = int_to_ptr.vmem [resolvable:$true] %s32
      %38 = dma.hbm_to_vmem [thread:$0]  %s1, 512, %s33, [#allocation5], 128, 128, 8
    $region9: #{encoder_forward.1} parent=1 // pred_fallthru
      _
    // Predicated region
    $region10: #{encoder_forward.1} parent=1 // pred_check
      _
    $region11: #{encoder_forward.1} parent=1 // pred_check_branch
      %40 = sbr.rel (0) target = $region13
    $region12: #{encoder_forward.1} parent=1 // pred_region
      _
    $region13: #{encoder_forward.1} parent=1 // pred_fallthru
      _
    // Predicated region
    $region14: #{encoder_forward.1} parent=1 // pred_check
      _
    $region15: #{encoder_forward.1} parent=1 // pred_check_branch
      %42 = sbr.rel (0) target = $region17
    $region16: #{encoder_forward.1} parent=1 // pred_region
      %s44 = ssub.s32 2048, 2048
      %45 = vsyncadd [#allocation5], %s44
      %s46 = sshll.u32 [#allocation6], 4
      %s47 = int_to_ptr.vmem [resolvable:$true] %s46
      %52 = dma.hbm_to_vmem [thread:$0]  %s3, 2048, %s47, [#allocation5], 128, 128, 8
    $region17: #{encoder_forward.1} parent=1 // pred_fallthru
      _
    // Predicated region
    $region18: #{encoder_forward.1} parent=1 // pred_check
      _
    $region19: #{encoder_forward.1} parent=1 // pred_check_branch
      %54 = sbr.rel (0) target = $region21
    $region20: #{encoder_forward.1} parent=1 // pred_region
      _
    $region21: #{encoder_forward.1} parent=1 // pred_fallthru
      _
    // Predicated region
    $region22: #{encoder_forward.1} parent=1 // pred_check
      _
    $region23: #{encoder_forward.1} parent=1 // pred_check_branch
      %56 = sbr.rel (0) target = $region25
    $region24: #{encoder_forward.1} parent=1 // pred_region
      %s58 = ssub.s32 4096, 4096
      %59 = vsyncadd [#allocation8], %s58
      %s60 = sshll.u32 [#allocation7], 4
      %s61 = int_to_ptr.vmem [resolvable:$true] %s60
      %66 = dma.hbm_to_vmem [thread:$0]  %s5, 4096, %s61, [#allocation8], 256, 256, 16
    $region25: #{encoder_forward.1} parent=1 // pred_fallthru
      _
    // Predicated region
    $region26: #{encoder_forward.1} parent=1 // pred_check
      _
    $region27: #{encoder_forward.1} parent=1 // pred_check_branch
      %68 = sbr.rel (0) target = $region29
    $region28: #{encoder_forward.1} parent=1 // pred_region
      _
    $region29: #{encoder_forward.1} parent=1 // pred_fallthru
      _
    // Predicated region
    $region30: #{encoder_forward.1} parent=1 // pred_check
      _
    $region31: #{encoder_forward.1} parent=1 // pred_check_branch
      %70 = sbr.rel (0) target = $region33
    $region32: #{encoder_forward.1} parent=1 // pred_region
      %71 = dma.done [#allocation3], 256
    $region33: #{encoder_forward.1} parent=1 // pred_fallthru
      _
    // Predicated region
    $region34: #{encoder_forward.1} parent=1 // pred_check
      _
    $region35: #{encoder_forward.1} parent=1 // pred_check_branch
      %73 = sbr.rel (0) target = $region37
    $region36: #{encoder_forward.1} parent=1 // pred_region
      %74 = dma.done [#allocation5], 512
    $region37: #{encoder_forward.1} parent=1 // pred_fallthru
      _
    // Predicated region
    $region38: #{encoder_forward.1} parent=1 // pred_check
      _
    $region39: #{encoder_forward.1} parent=1 // pred_check_branch
      %76 = sbr.rel (0) target = $region41
    $region40: #{encoder_forward.1} parent=1 // pred_region
      %77 = dma.done [#allocation5], 2048
    $region41: #{encoder_forward.1} parent=1 // pred_fallthru
      _
    // Predicated region
    $region42: #{encoder_forward.1} parent=1 // pred_check
      _
    $region43: #{encoder_forward.1} parent=1 // pred_check_branch
      %79 = sbr.rel (0) target = $region45
    $region44: #{encoder_forward.1} parent=1 // pred_region
      %80 = dma.done [#allocation8], 4096
    $region45: #{encoder_forward.1} parent=1 // pred_fallthru
      _
    %v81 = vld [vmem:[#allocation2] sm:$0xff]
    %v82 = vld [vmem:[#allocation2 + $0x8] sm:$0xff]
    %v83 = vld [vmem:[#allocation4] sm:$0xff]
    %v84 = vld [vmem:[#allocation4 + $0x8] sm:$0xff]
    %v85 = vld [vmem:[#allocation4 + $0x10] sm:$0xff]
    %v86 = vld [vmem:[#allocation4 + $0x18] sm:$0xff]
    %v87 = vld [vmem:[%s2] sm:$0x1]
    %v89 = vlaneseq
    %v90 = vshrl.u32 %v89, 7
    %v91 = vsub.s32 0, %v90
    %v92 = vrot.slane %v87, %v91
    %vm94 = vcmask 261120
    %v96 = vsel %vm94, %v81, 0
    %v99 = vsel %vm94, %v82, 0
    %101 = vmatprep.subr.mxu0 0.0
    %102 = vmatpush1.msra.mxu0 %v83
    %103 = vmatprep.subr.mxu0 0.0
    %104 = vmatpush1.msra.mxu0 %v84
    %105 = vmatprep.subr.mxu0 0.0
    %106 = vmatpush1.msra.mxu0 %v85
    %107 = vmatprep.subr.mxu0 0.0
    %108 = vmatpush1.msra.mxu0 %v86
    %109 = vmatprep.subr.mxu0 0.0
    %110 = vmatpush1.msra.mxu0 0.0
    %111 = vmatprep.subr.mxu0 0.0
    %112 = vmatpush1.msra.mxu0 0.0
    %113 = vmatprep.subr.mxu0 0.0
    %114 = vmatpush1.msra.mxu0 0.0
    %115 = vmatprep.subr.mxu0 0.0
    %116 = vmatpush1.msra.mxu0 0.0
    %117 = vmatprep.subr.mxu0 0.0
    %118 = vmatpush1.msra.mxu0 0.0
    %119 = vmatprep.subr.mxu0 0.0
    %120 = vmatpush1.msra.mxu0 0.0
    %121 = vmatprep.subr.mxu0 0.0
    %122 = vmatpush1.msra.mxu0 0.0
    %123 = vmatprep.subr.mxu0 0.0
    %124 = vmatpush1.msra.mxu0 0.0
    %125 = vmatprep.subr.mxu0 0.0
    %126 = vmatpush1.msra.mxu0 0.0
    %127 = vmatprep.subr.mxu0 0.0
    %128 = vmatpush1.msra.mxu0 0.0
    %129 = vmatprep.subr.mxu0 0.0
    %130 = vmatpush1.msra.mxu0 0.0
    %131 = vmatprep.subr.mxu0 0.0
    %132 = vmatpush1.msra.mxu0 0.0
    %133 = vmatprep.subr.mxu0 0.0
    %134 = vmatpush1.msra.mxu0 0.0
    %135 = vmatprep.subr.mxu0 0.0
    %136 = vmatpush1.msra.mxu0 0.0
    %137 = vmatprep.subr.mxu0 0.0
    %138 = vmatpush1.msra.mxu0 0.0
    %139 = vmatprep.subr.mxu0 0.0
    %140 = vmatpush1.msra.mxu0 0.0
    %141 = vmatprep.subr.mxu0 0.0
    %142 = vmatpush1.msra.mxu0 0.0
    %143 = vmatprep.subr.mxu0 0.0
    %144 = vmatpush1.msra.mxu0 0.0
    %145 = vmatprep.subr.mxu0 0.0
    %146 = vmatpush1.msra.mxu0 0.0
    %147 = vmatprep.subr.mxu0 0.0
    %148 = vmatpush1.msra.mxu0 0.0
    %149 = vmatprep.subr.mxu0 0.0
    %150 = vmatpush1.msra.mxu0 0.0
    %151 = vmatprep.subr.mxu0 0.0
    %152 = vmatpush1.msra.mxu0 0.0
    %153 = vmatprep.subr.mxu0 0.0
    %154 = vmatpush1.msra.mxu0 0.0
    %155 = vmatprep.subr.mxu0 0.0
    %156 = vmatpush1.msra.mxu0 0.0
    %157 = vmatprep.subr.mxu0 0.0
    %158 = vmatpush1.msra.mxu0 0.0
    %159 = vmatprep.subr.mxu0 0.0
    %160 = vmatpush1.msra.mxu0 0.0
    %161 = vmatprep.subr.mxu0 0.0
    %162 = vmatpush1.msra.mxu0 0.0
    %163 = vmatprep.subr.mxu0 0.0
    %164 = vmatpush1.msra.mxu0 0.0
    %165 = vmatprep.mubr.f32.mxu0 0.0
    %166 = vmatmul.mubr.f32.gmra.mrb[0].mxu0 %v96
    %v167 = vpop.f32.mrb[0].mxu0
    %v168 = vadd.f32 %v92, %v167
    %v169 = vpop.f32.mrb[0].mxu0
    %170 = vmatprep.mubr.f32.mxu0 0.0
    %171 = vmatmul.mubr.f32.gmra.mrb[0].mxu0 %v99
    %v172 = vpop.f32.mrb[0].mxu0
    %v173 = vadd.f32 %v92, %v172
    %v174 = vpop.f32.mrb[0].mxu0
    %175 = vdwg.mxu0
    %v176 = vmax.f32 %v168, 0.0
    %v177 = vmax.f32 %v173, 0.0
    %v178 = vld [vmem:[#allocation6] sm:$0xff]
    %v179 = vld [vmem:[#allocation6 + $0x8] sm:$0xff]
    %v180 = vld [vmem:[#allocation6 + $0x10] sm:$0xff]
    %v181 = vld [vmem:[#allocation6 + $0x18] sm:$0xff]
    %v182 = vld [vmem:[#allocation6 + $0x20] sm:$0xff]
    %v183 = vld [vmem:[#allocation6 + $0x28] sm:$0xff]
    %v184 = vld [vmem:[#allocation6 + $0x30] sm:$0xff]
    %v185 = vld [vmem:[#allocation6 + $0x38] sm:$0xff]
    %v186 = vld [vmem:[#allocation6 + $0x40] sm:$0xff]
    %v187 = vld [vmem:[#allocation6 + $0x48] sm:$0xff]
    %v188 = vld [vmem:[#allocation6 + $0x50] sm:$0xff]
    %v189 = vld [vmem:[#allocation6 + $0x58] sm:$0xff]
    %v190 = vld [vmem:[#allocation6 + $0x60] sm:$0xff]
    %v191 = vld [vmem:[#allocation6 + $0x68] sm:$0xff]
    %v192 = vld [vmem:[#allocation6 + $0x70] sm:$0xff]
    %v193 = vld [vmem:[#allocation6 + $0x78] sm:$0xff]
    %v194 = vld [vmem:[%s4] sm:$0x1]
    %v196 = vlaneseq
    %v197 = vshrl.u32 %v196, 7
    %v198 = vsub.s32 0, %v197
    %v199 = vrot.slane %v194, %v198
    %201 = vmatprep.subr.mxu0 0.0
    %202 = vmatpush1.msra.mxu0 %v178
    %203 = vmatprep.subr.mxu0 0.0
    %204 = vmatpush1.msra.mxu0 %v179
    %205 = vmatprep.subr.mxu0 0.0
    %206 = vmatpush1.msra.mxu0 %v180
    %207 = vmatprep.subr.mxu0 0.0
    %208 = vmatpush1.msra.mxu0 %v181
    %209 = vmatprep.subr.mxu0 0.0
    %210 = vmatpush1.msra.mxu0 %v182
    %211 = vmatprep.subr.mxu0 0.0
    %212 = vmatpush1.msra.mxu0 %v183
    %213 = vmatprep.subr.mxu0 0.0
    %214 = vmatpush1.msra.mxu0 %v184
    %215 = vmatprep.subr.mxu0 0.0
    %216 = vmatpush1.msra.mxu0 %v185
    %217 = vmatprep.subr.mxu0 0.0
    %218 = vmatpush1.msra.mxu0 %v186
    %219 = vmatprep.subr.mxu0 0.0
    %220 = vmatpush1.msra.mxu0 %v187
    %221 = vmatprep.subr.mxu0 0.0
    %222 = vmatpush1.msra.mxu0 %v188
    %223 = vmatprep.subr.mxu0 0.0
    %224 = vmatpush1.msra.mxu0 %v189
    %225 = vmatprep.subr.mxu0 0.0
    %226 = vmatpush1.msra.mxu0 %v190
    %227 = vmatprep.subr.mxu0 0.0
    %228 = vmatpush1.msra.mxu0 %v191
    %229 = vmatprep.subr.mxu0 0.0
    %230 = vmatpush1.msra.mxu0 %v192
    %231 = vmatprep.subr.mxu0 0.0
    %232 = vmatpush1.msra.mxu0 %v193
    %233 = vmatprep.subr.mxu0 0.0
    %234 = vmatpush1.msra.mxu0 0.0
    %235 = vmatprep.subr.mxu0 0.0
    %236 = vmatpush1.msra.mxu0 0.0
    %237 = vmatprep.subr.mxu0 0.0
    %238 = vmatpush1.msra.mxu0 0.0
    %239 = vmatprep.subr.mxu0 0.0
    %240 = vmatpush1.msra.mxu0 0.0
    %241 = vmatprep.subr.mxu0 0.0
    %242 = vmatpush1.msra.mxu0 0.0
    %243 = vmatprep.subr.mxu0 0.0
    %244 = vmatpush1.msra.mxu0 0.0
    %245 = vmatprep.subr.mxu0 0.0
    %246 = vmatpush1.msra.mxu0 0.0
    %247 = vmatprep.subr.mxu0 0.0
    %248 = vmatpush1.msra.mxu0 0.0
    %249 = vmatprep.subr.mxu0 0.0
    %250 = vmatpush1.msra.mxu0 0.0
    %251 = vmatprep.subr.mxu0 0.0
    %252 = vmatpush1.msra.mxu0 0.0
    %253 = vmatprep.subr.mxu0 0.0
    %254 = vmatpush1.msra.mxu0 0.0
    %255 = vmatprep.subr.mxu0 0.0
    %256 = vmatpush1.msra.mxu0 0.0
    %257 = vmatprep.subr.mxu0 0.0
    %258 = vmatpush1.msra.mxu0 0.0
    %259 = vmatprep.subr.mxu0 0.0
    %260 = vmatpush1.msra.mxu0 0.0
    %261 = vmatprep.subr.mxu0 0.0
    %262 = vmatpush1.msra.mxu0 0.0
    %263 = vmatprep.subr.mxu0 0.0
    %264 = vmatpush1.msra.mxu0 0.0
    %265 = vmatprep.mubr.f32.mxu0 0.0
    %266 = vmatmul.mubr.f32.gmra.mrb[0].mxu0 %v176
    %v267 = vpop.f32.mrb[0].mxu0
    %v268 = vadd.f32 %v199, %v267
    %v269 = vpop.f32.mrb[0].mxu0
    %270 = vmatprep.mubr.f32.mxu0 0.0
    %271 = vmatmul.mubr.f32.gmra.mrb[0].mxu0 %v177
    %v272 = vpop.f32.mrb[0].mxu0
    %v273 = vadd.f32 %v199, %v272
    %v274 = vpop.f32.mrb[0].mxu0
    %275 = vdwg.mxu0
    %v276 = vmax.f32 %v268, 0.0
    %v277 = vmax.f32 %v273, 0.0
    %v278 = vld [vmem:[#allocation7] sm:$0xff]
    %v279 = vld [vmem:[#allocation7 + $0x8] sm:$0xff]
    %v280 = vld [vmem:[#allocation7 + $0x10] sm:$0xff]
    %v281 = vld [vmem:[#allocation7 + $0x18] sm:$0xff]
    %v282 = vld [vmem:[#allocation7 + $0x20] sm:$0xff]
    %v283 = vld [vmem:[#allocation7 + $0x28] sm:$0xff]
    %v284 = vld [vmem:[#allocation7 + $0x30] sm:$0xff]
    %v285 = vld [vmem:[#allocation7 + $0x38] sm:$0xff]
    %v286 = vld [vmem:[#allocation7 + $0x40] sm:$0xff]
    %v287 = vld [vmem:[#allocation7 + $0x48] sm:$0xff]
    %v288 = vld [vmem:[#allocation7 + $0x50] sm:$0xff]
    %v289 = vld [vmem:[#allocation7 + $0x58] sm:$0xff]
    %v290 = vld [vmem:[#allocation7 + $0x60] sm:$0xff]
    %v291 = vld [vmem:[#allocation7 + $0x68] sm:$0xff]
    %v292 = vld [vmem:[#allocation7 + $0x70] sm:$0xff]
    %v293 = vld [vmem:[#allocation7 + $0x78] sm:$0xff]
    %v294 = vld [vmem:[#allocation7 + $0x80] sm:$0xff]
    %v295 = vld [vmem:[#allocation7 + $0x88] sm:$0xff]
    %v296 = vld [vmem:[#allocation7 + $0x90] sm:$0xff]
    %v297 = vld [vmem:[#allocation7 + $0x98] sm:$0xff]
    %v298 = vld [vmem:[#allocation7 + $0xa0] sm:$0xff]
    %v299 = vld [vmem:[#allocation7 + $0xa8] sm:$0xff]
    %v300 = vld [vmem:[#allocation7 + $0xb0] sm:$0xff]
    %v301 = vld [vmem:[#allocation7 + $0xb8] sm:$0xff]
    %v302 = vld [vmem:[#allocation7 + $0xc0] sm:$0xff]
    %v303 = vld [vmem:[#allocation7 + $0xc8] sm:$0xff]
    %v304 = vld [vmem:[#allocation7 + $0xd0] sm:$0xff]
    %v305 = vld [vmem:[#allocation7 + $0xd8] sm:$0xff]
    %v306 = vld [vmem:[#allocation7 + $0xe0] sm:$0xff]
    %v307 = vld [vmem:[#allocation7 + $0xe8] sm:$0xff]
    %v308 = vld [vmem:[#allocation7 + $0xf0] sm:$0xff]
    %v309 = vld [vmem:[#allocation7 + $0xf8] sm:$0xff]
    %v310 = vld [vmem:[%s6] sm:$0x3]
    %v312 = vlaneseq
    %v313 = vshrl.u32 %v312, 7
    %v314 = vsub.s32 0, %v313
    %v315 = vrot.slane %v310, %v314
    %v316 = vlaneseq
    %v317 = vshrl.u32 %v316, 7
    %v318 = vsub.s32 1, %v317
    %v319 = vrot.slane %v310, %v318
    %322 = vmatprep.subr.mxu0 %v279
    %323 = vmatpush1.msra.mxu0 %v278
    %324 = vmatprep.subr.mxu0 %v281
    %325 = vmatpush1.msra.mxu0 %v280
    %326 = vmatprep.subr.mxu0 %v283
    %327 = vmatpush1.msra.mxu0 %v282
    %328 = vmatprep.subr.mxu0 %v285
    %329 = vmatpush1.msra.mxu0 %v284
    %330 = vmatprep.subr.mxu0 %v287
    %331 = vmatpush1.msra.mxu0 %v286
    %332 = vmatprep.subr.mxu0 %v289
    %333 = vmatpush1.msra.mxu0 %v288
    %334 = vmatprep.subr.mxu0 %v291
    %335 = vmatpush1.msra.mxu0 %v290
    %336 = vmatprep.subr.mxu0 %v293
    %337 = vmatpush1.msra.mxu0 %v292
    %338 = vmatprep.subr.mxu0 %v295
    %339 = vmatpush1.msra.mxu0 %v294
    %340 = vmatprep.subr.mxu0 %v297
    %341 = vmatpush1.msra.mxu0 %v296
    %342 = vmatprep.subr.mxu0 %v299
    %343 = vmatpush1.msra.mxu0 %v298
    %344 = vmatprep.subr.mxu0 %v301
    %345 = vmatpush1.msra.mxu0 %v300
    %346 = vmatprep.subr.mxu0 %v303
    %347 = vmatpush1.msra.mxu0 %v302
    %348 = vmatprep.subr.mxu0 %v305
    %349 = vmatpush1.msra.mxu0 %v304
    %350 = vmatprep.subr.mxu0 %v307
    %351 = vmatpush1.msra.mxu0 %v306
    %352 = vmatprep.subr.mxu0 %v309
    %353 = vmatpush1.msra.mxu0 %v308
    %354 = vmatprep.subr.mxu0 0.0
    %355 = vmatpush1.msra.mxu0 0.0
    %356 = vmatprep.subr.mxu0 0.0
    %357 = vmatpush1.msra.mxu0 0.0
    %358 = vmatprep.subr.mxu0 0.0
    %359 = vmatpush1.msra.mxu0 0.0
    %360 = vmatprep.subr.mxu0 0.0
    %361 = vmatpush1.msra.mxu0 0.0
    %362 = vmatprep.subr.mxu0 0.0
    %363 = vmatpush1.msra.mxu0 0.0
    %364 = vmatprep.subr.mxu0 0.0
    %365 = vmatpush1.msra.mxu0 0.0
    %366 = vmatprep.subr.mxu0 0.0
    %367 = vmatpush1.msra.mxu0 0.0
    %368 = vmatprep.subr.mxu0 0.0
    %369 = vmatpush1.msra.mxu0 0.0
    %370 = vmatprep.subr.mxu0 0.0
    %371 = vmatpush1.msra.mxu0 0.0
    %372 = vmatprep.subr.mxu0 0.0
    %373 = vmatpush1.msra.mxu0 0.0
    %374 = vmatprep.subr.mxu0 0.0
    %375 = vmatpush1.msra.mxu0 0.0
    %376 = vmatprep.subr.mxu0 0.0
    %377 = vmatpush1.msra.mxu0 0.0
    %378 = vmatprep.subr.mxu0 0.0
    %379 = vmatpush1.msra.mxu0 0.0
    %380 = vmatprep.subr.mxu0 0.0
    %381 = vmatpush1.msra.mxu0 0.0
    %382 = vmatprep.subr.mxu0 0.0
    %383 = vmatpush1.msra.mxu0 0.0
    %384 = vmatprep.subr.mxu0 0.0
    %385 = vmatpush1.msra.mxu0 0.0
    %386 = vmatprep.mubr.f32.mxu0 0.0
    %387 = vmatmul.mubr.f32.gmra.mrb[0].mxu0 %v276
    %v388 = vpop.f32.mrb[0].mxu0
    %v389 = vadd.f32 %v315, %v388
    %v390 = vpop.f32.mrb[0].mxu0
    %v391 = vadd.f32 %v319, %v390
    %392 = vmatprep.mubr.f32.mxu0 0.0
    %393 = vmatmul.mubr.f32.gmra.mrb[0].mxu0 %v277
    %v394 = vpop.f32.mrb[0].mxu0
    %v395 = vadd.f32 %v315, %v394
    %v396 = vpop.f32.mrb[0].mxu0
    %v397 = vadd.f32 %v319, %v396
    %398 = vdwg.mxu0
    %399 = vst [vmem:[%s7] sm:$0xff] %v389
    %400 = vst [vmem:[%s7 + $0x8] sm:$0xff] %v391
    %401 = vst [vmem:[%s7 + $0x10] sm:$0xff] %v395
    %402 = vst [vmem:[%s7 + $0x18] sm:$0xff] %v397
    // Predicated region
    $region46: #{encoder_forward.1} parent=1 // pred_check
      _
    $region47: #{encoder_forward.1} parent=1 // pred_check_branch
      %404 = sbr.rel (0) target = $region49
    $region48: #{encoder_forward.1} parent=1 // pred_region
      _
    $region49: #{encoder_forward.1} parent=1 // pred_fallthru
      _
    // Predicated region
    $region50: #{encoder_forward.1} parent=1 // pred_check
      _
    $region51: #{encoder_forward.1} parent=1 // pred_check_branch
      %406 = sbr.rel (0) target = $region53
    $region52: #{encoder_forward.1} parent=1 // pred_region
      _
    $region53: #{encoder_forward.1} parent=1 // pred_fallthru
      _
    %407 = vsyncpa [#allocation3], 1
    %408 = vsyncpa [#allocation5], 1
    %409 = vsyncpa [#allocation8], 1

// kernel: encoder_forward.1
$region0: #{encoder_forward.1}
  #allocation0 [shape = 'u32[]', space=smem, size = 0x4, offset = 0x4, fixed_abs, tag = 'smem constant byte address 0x4 - core index']
  #allocation1 [shape = 'u32[144,128]{1,0:T(1,128)}', space=vmem, size = 0x12000, scoped, tag = 'internal scratch']
  %s0 = inlined_call_operand.hbm [shape: f32[16,32], index: 0, kind: input, shape index: {}]
  %s1 = inlined_call_operand.hbm [shape: f32[32,128], index: 1, kind: input, shape index: {}]
  %s2 = inlined_call_operand.vmem [shape: f32[1,128], index: 2, kind: input, shape index: {}]
  %s3 = inlined_call_operand.hbm [shape: f32[128,128], index: 3, kind: input, shape index: {}]
  %s4 = inlined_call_operand.vmem [shape: f32[1,128], index: 4, kind: input, shape index: {}]
  %s5 = inlined_call_operand.hbm [shape: f32[128,256], index: 5, kind: input, shape index: {}]
  %s6 = inlined_call_operand.vmem [shape: f32[1,256], index: 6, kind: input, shape index: {}]
  %s7 = inlined_call_operand.vmem [shape: f32[16,256], index: 7, kind: output, shape index: {}]
  %s8 = sld [smem:[#allocation0]]
  $region54: #{encoder_forward.1} parent=0
    _
  %s10 = ssub.s32 1, %s8
  %s11 = scalar_select 0, %s10, %s8
  $region1: #{encoder_forward.1} parent=0
    #allocation2 [shape = 'u8[8192]{0}', space=vmem, size = 0x2000, scoped, tag = 'input window, operand 0, single buffered']
    #allocation3 [shape = 's32[1]{0}', space=sflag, size = 0x4, scoped, tag = 'scoped memory for encoder_forward.1']
    #allocation4 [shape = 'u8[16384]{0}', space=vmem, size = 0x4000, scoped, tag = 'input window, operand 1, single buffered']
    #allocation5 [shape = 's32[1]{0}', space=sflag, size = 0x4, scoped, tag = 'scoped memory for encoder_forward.1']
    #allocation6 [shape = 'u8[65536]{0}', space=vmem, size = 0x10000, scoped, tag = 'input window, operand 3, single buffered']
    #allocation7 [shape = 'u8[131072]{0}', space=vmem, size = 0x20000, scoped, tag = 'input window, operand 5, single buffered']
    #allocation8 [shape = 's32[1]{0}', space=sflag, size = 0x4, scoped, tag = 'scoped memory for encoder_forward.1']
    %12 = vsyncpa [#allocation3], 0
    %13 = vsyncpa [#allocation5], 0
    %14 = vsyncpa [#allocation8], 0
    // Predicated region
    $region2: #{encoder_forward.1} parent=1 // pred_check
      _
    $region3: #{encoder_forward.1} parent=1 // pred_check_branch
      %16 = sbr.rel (0) target = $region5
    $region4: #{encoder_forward.1} parent=1 // pred_region
      %s18 = ssub.s32 256, 256
      %19 = vsyncadd [#allocation3], %s18
      %s20 = sshll.u32 [#allocation2], 4
      %s21 = int_to_ptr.vmem [resolvable:$true] %s20
      %26 = dma.hbm_to_vmem [thread:$0]  %s0, 256, %s21, [#allocation3], 128, 128, 8
    $region5: #{encoder_forward.1} parent=1 // pred_fallthru
      _
    // Predicated region
    $region6: #{encoder_forward.1} parent=1 // pred_check
      _
    $region7: #{encoder_forward.1} parent=1 // pred_check_branch
      %28 = sbr.rel (0) target = $region9
    $region8: #{encoder_forward.1} parent=1 // pred_region
      %s30 = ssub.s32 512, 512
      %31 = vsyncadd [#allocation5], %s30
      %s32 = sshll.u32 [#allocation4], 4
      %s33 = int_to_ptr.vmem [resolvable:$true] %s32
      %38 = dma.hbm_to_vmem [thread:$0]  %s1, 512, %s33, [#allocation5], 128, 128, 8
    $region9: #{encoder_forward.1} parent=1 // pred_fallthru
      _
    // Predicated region
    $region10: #{encoder_forward.1} parent=1 // pred_check
      _
    $region11: #{encoder_forward.1} parent=1 // pred_check_branch
      %40 = sbr.rel (0) target = $region13
    $region12: #{encoder_forward.1} parent=1 // pred_region
      _
    $region13: #{encoder_forward.1} parent=1 // pred_fallthru
      _
    // Predicated region
    $region14: #{encoder_forward.1} parent=1 // pred_check
      _
    $region15: #{encoder_forward.1} parent=1 // pred_check_branch
      %42 = sbr.rel (0) target = $region17
    $region16: #{encoder_forward.1} parent=1 // pred_region
      %s44 = ssub.s32 2048, 2048
      %45 = vsyncadd [#allocation5], %s44
      %s46 = sshll.u32 [#allocation6], 4
      %s47 = int_to_ptr.vmem [resolvable:$true] %s46
      %52 = dma.hbm_to_vmem [thread:$0]  %s3, 2048, %s47, [#allocation5], 128, 128, 8
    $region17: #{encoder_forward.1} parent=1 // pred_fallthru
      _
    // Predicated region
    $region18: #{encoder_forward.1} parent=1 // pred_check
      _
    $region19: #{encoder_forward.1} parent=1 // pred_check_branch
      %54 = sbr.rel (0) target = $region21
    $region20: #{encoder_forward.1} parent=1 // pred_region
      _
    $region21: #{encoder_forward.1} parent=1 // pred_fallthru
      _
    // Predicated region
    $region22: #{encoder_forward.1} parent=1 // pred_check
      _
    $region23: #{encoder_forward.1} parent=1 // pred_check_branch
      %56 = sbr.rel (0) target = $region25
    $region24: #{encoder_forward.1} parent=1 // pred_region
      %s58 = ssub.s32 4096, 4096
      %59 = vsyncadd [#allocation8], %s58
      %s60 = sshll.u32 [#allocation7], 4
      %s61 = int_to_ptr.vmem [resolvable:$true] %s60
      %66 = dma.hbm_to_vmem [thread:$0]  %s5, 4096, %s61, [#allocation8], 256, 256, 16
    $region25: #{encoder_forward.1} parent=1 // pred_fallthru
      _
    // Predicated region
    $region26: #{encoder_forward.1} parent=1 // pred_check
      _
    $region27: #{encoder_forward.1} parent=1 // pred_check_branch
      %68 = sbr.rel (0) target = $region29
    $region28: #{encoder_forward.1} parent=1 // pred_region
      _
    $region29: #{encoder_forward.1} parent=1 // pred_fallthru
      _
    // Predicated region
    $region30: #{encoder_forward.1} parent=1 // pred_check
      _
    $region31: #{encoder_forward.1} parent=1 // pred_check_branch
      %70 = sbr.rel (0) target = $region33
    $region32: #{encoder_forward.1} parent=1 // pred_region
      %71 = dma.done [#allocation3], 256
    $region33: #{encoder_forward.1} parent=1 // pred_fallthru
      _
    // Predicated region
    $region34: #{encoder_forward.1} parent=1 // pred_check
      _
    $region35: #{encoder_forward.1} parent=1 // pred_check_branch
      %73 = sbr.rel (0) target = $region37
    $region36: #{encoder_forward.1} parent=1 // pred_region
      %74 = dma.done [#allocation5], 512
    $region37: #{encoder_forward.1} parent=1 // pred_fallthru
      _
    // Predicated region
    $region38: #{encoder_forward.1} parent=1 // pred_check
      _
    $region39: #{encoder_forward.1} parent=1 // pred_check_branch
      %76 = sbr.rel (0) target = $region41
    $region40: #{encoder_forward.1} parent=1 // pred_region
      %77 = dma.done [#allocation5], 2048
    $region41: #{encoder_forward.1} parent=1 // pred_fallthru
      _
    // Predicated region
    $region42: #{encoder_forward.1} parent=1 // pred_check
      _
    $region43: #{encoder_forward.1} parent=1 // pred_check_branch
      %79 = sbr.rel (0) target = $region45
    $region44: #{encoder_forward.1} parent=1 // pred_region
      %80 = dma.done [#allocation8], 4096
    $region45: #{encoder_forward.1} parent=1 // pred_fallthru
      _
    %v81 = vld [vmem:[#allocation2] sm:$0xff]
    %v82 = vld [vmem:[#allocation2 + $0x8] sm:$0xff]
    %v83 = vld [vmem:[#allocation4] sm:$0xff]
    %v84 = vld [vmem:[#allocation4 + $0x8] sm:$0xff]
    %v85 = vld [vmem:[#allocation4 + $0x10] sm:$0xff]
    %v86 = vld [vmem:[#allocation4 + $0x18] sm:$0xff]
    %v87 = vld [vmem:[%s2] sm:$0x1]
    %v89 = vlaneseq
    %v90 = vshrl.u32 %v89, 7
    %v91 = vsub.s32 0, %v90
    %v92 = vrot.slane %v87, %v91
    %vm94 = vcmask 261120
    %v96 = vsel %vm94, %v81, 0
    %v99 = vsel %vm94, %v82, 0
    %101 = vmatprep.subr.mxu0 0.0
    %102 = vmatpush1.msra.mxu0 %v83
    %103 = vmatprep.subr.mxu0 0.0
    %104 = vmatpush1.msra.mxu0 %v84
    %105 = vmatprep.subr.mxu0 0.0
    %106 = vmatpush1.msra.mxu0 %v85
    %107 = vmatprep.subr.mxu0 0.0
    %108 = vmatpush1.msra.mxu0 %v86
    %109 = vmatprep.subr.mxu0 0.0
    %110 = vmatpush1.msra.mxu0 0.0
    %111 = vmatprep.subr.mxu0 0.0
    %112 = vmatpush1.msra.mxu0 0.0
    %113 = vmatprep.subr.mxu0 0.0
    %114 = vmatpush1.msra.mxu0 0.0
    %115 = vmatprep.subr.mxu0 0.0
    %116 = vmatpush1.msra.mxu0 0.0
    %117 = vmatprep.subr.mxu0 0.0
    %118 = vmatpush1.msra.mxu0 0.0
    %119 = vmatprep.subr.mxu0 0.0
    %120 = vmatpush1.msra.mxu0 0.0
    %121 = vmatprep.subr.mxu0 0.0
    %122 = vmatpush1.msra.mxu0 0.0
    %123 = vmatprep.subr.mxu0 0.0
    %124 = vmatpush1.msra.mxu0 0.0
    %125 = vmatprep.subr.mxu0 0.0
    %126 = vmatpush1.msra.mxu0 0.0
    %127 = vmatprep.subr.mxu0 0.0
    %128 = vmatpush1.msra.mxu0 0.0
    %129 = vmatprep.subr.mxu0 0.0
    %130 = vmatpush1.msra.mxu0 0.0
    %131 = vmatprep.subr.mxu0 0.0
    %132 = vmatpush1.msra.mxu0 0.0
    %133 = vmatprep.subr.mxu0 0.0
    %134 = vmatpush1.msra.mxu0 0.0
    %135 = vmatprep.subr.mxu0 0.0
    %136 = vmatpush1.msra.mxu0 0.0
    %137 = vmatprep.subr.mxu0 0.0
    %138 = vmatpush1.msra.mxu0 0.0
    %139 = vmatprep.subr.mxu0 0.0
    %140 = vmatpush1.msra.mxu0 0.0
    %141 = vmatprep.subr.mxu0 0.0
    %142 = vmatpush1.msra.mxu0 0.0
    %143 = vmatprep.subr.mxu0 0.0
    %144 = vmatpush1.msra.mxu0 0.0
    %145 = vmatprep.subr.mxu0 0.0
    %146 = vmatpush1.msra.mxu0 0.0
    %147 = vmatprep.subr.mxu0 0.0
    %148 = vmatpush1.msra.mxu0 0.0
    %149 = vmatprep.subr.mxu0 0.0
    %150 = vmatpush1.msra.mxu0 0.0
    %151 = vmatprep.subr.mxu0 0.0
    %152 = vmatpush1.msra.mxu0 0.0
    %153 = vmatprep.subr.mxu0 0.0
    %154 = vmatpush1.msra.mxu0 0.0
    %155 = vmatprep.subr.mxu0 0.0
    %156 = vmatpush1.msra.mxu0 0.0
    %157 = vmatprep.subr.mxu0 0.0
    %158 = vmatpush1.msra.mxu0 0.0
    %159 = vmatprep.subr.mxu0 0.0
    %160 = vmatpush1.msra.mxu0 0.0
    %161 = vmatprep.subr.mxu0 0.0
    %162 = vmatpush1.msra.mxu0 0.0
    %163 = vmatprep.subr.mxu0 0.0
    %164 = vmatpush1.msra.mxu0 0.0
    %165 = vmatprep.mubr.f32.mxu0 0.0
    %166 = vmatmul.mubr.f32.gmra.mrb[0].mxu0 %v96
    %v167 = vpop.f32.mrb[0].mxu0
    %v168 = vadd.f32 %v92, %v167
    %v169 = vpop.f32.mrb[0].mxu0
    %170 = vmatprep.mubr.f32.mxu0 0.0
    %171 = vmatmul.mubr.f32.gmra.mrb[0].mxu0 %v99
    %v172 = vpop.f32.mrb[0].mxu0
    %v173 = vadd.f32 %v92, %v172
    %v174 = vpop.f32.mrb[0].mxu0
    %175 = vdwg.mxu0
    %v176 = vmax.f32 %v168, 0.0
    %v177 = vmax.f32 %v173, 0.0
    %v178 = vld [vmem:[#allocation6] sm:$0xff]
    %v179 = vld [vmem:[#allocation6 + $0x8] sm:$0xff]
    %v180 = vld [vmem:[#allocation6 + $0x10] sm:$0xff]
    %v181 = vld [vmem:[#allocation6 + $0x18] sm:$0xff]
    %v182 = vld [vmem:[#allocation6 + $0x20] sm:$0xff]
    %v183 = vld [vmem:[#allocation6 + $0x28] sm:$0xff]
    %v184 = vld [vmem:[#allocation6 + $0x30] sm:$0xff]
    %v185 = vld [vmem:[#allocation6 + $0x38] sm:$0xff]
    %v186 = vld [vmem:[#allocation6 + $0x40] sm:$0xff]
    %v187 = vld [vmem:[#allocation6 + $0x48] sm:$0xff]
    %v188 = vld [vmem:[#allocation6 + $0x50] sm:$0xff]
    %v189 = vld [vmem:[#allocation6 + $0x58] sm:$0xff]
    %v190 = vld [vmem:[#allocation6 + $0x60] sm:$0xff]
    %v191 = vld [vmem:[#allocation6 + $0x68] sm:$0xff]
    %v192 = vld [vmem:[#allocation6 + $0x70] sm:$0xff]
    %v193 = vld [vmem:[#allocation6 + $0x78] sm:$0xff]
    %v194 = vld [vmem:[%s4] sm:$0x1]
    %v196 = vlaneseq
    %v197 = vshrl.u32 %v196, 7
    %v198 = vsub.s32 0, %v197
    %v199 = vrot.slane %v194, %v198
    %201 = vmatprep.subr.mxu0 0.0
    %202 = vmatpush1.msra.mxu0 %v178
    %203 = vmatprep.subr.mxu0 0.0
    %204 = vmatpush1.msra.mxu0 %v179
    %205 = vmatprep.subr.mxu0 0.0
    %206 = vmatpush1.msra.mxu0 %v180
    %207 = vmatprep.subr.mxu0 0.0
    %208 = vmatpush1.msra.mxu0 %v181
    %209 = vmatprep.subr.mxu0 0.0
    %210 = vmatpush1.msra.mxu0 %v182
    %211 = vmatprep.subr.mxu0 0.0
    %212 = vmatpush1.msra.mxu0 %v183
    %213 = vmatprep.subr.mxu0 0.0
    %214 = vmatpush1.msra.mxu0 %v184
    %215 = vmatprep.subr.mxu0 0.0
    %216 = vmatpush1.msra.mxu0 %v185
    %217 = vmatprep.subr.mxu0 0.0
    %218 = vmatpush1.msra.mxu0 %v186
    %219 = vmatprep.subr.mxu0 0.0
    %220 = vmatpush1.msra.mxu0 %v187
    %221 = vmatprep.subr.mxu0 0.0
    %222 = vmatpush1.msra.mxu0 %v188
    %223 = vmatprep.subr.mxu0 0.0
    %224 = vmatpush1.msra.mxu0 %v189
    %225 = vmatprep.subr.mxu0 0.0
    %226 = vmatpush1.msra.mxu0 %v190
    %227 = vmatprep.subr.mxu0 0.0
    %228 = vmatpush1.msra.mxu0 %v191
    %229 = vmatprep.subr.mxu0 0.0
    %230 = vmatpush1.msra.mxu0 %v192
    %231 = vmatprep.subr.mxu0 0.0
    %232 = vmatpush1.msra.mxu0 %v193
    %233 = vmatprep.subr.mxu0 0.0
    %234 = vmatpush1.msra.mxu0 0.0
    %235 = vmatprep.subr.mxu0 0.0
    %236 = vmatpush1.msra.mxu0 0.0
    %237 = vmatprep.subr.mxu0 0.0
    %238 = vmatpush1.msra.mxu0 0.0
    %239 = vmatprep.subr.mxu0 0.0
    %240 = vmatpush1.msra.mxu0 0.0
    %241 = vmatprep.subr.mxu0 0.0
    %242 = vmatpush1.msra.mxu0 0.0
    %243 = vmatprep.subr.mxu0 0.0
    %244 = vmatpush1.msra.mxu0 0.0
    %245 = vmatprep.subr.mxu0 0.0
    %246 = vmatpush1.msra.mxu0 0.0
    %247 = vmatprep.subr.mxu0 0.0
    %248 = vmatpush1.msra.mxu0 0.0
    %249 = vmatprep.subr.mxu0 0.0
    %250 = vmatpush1.msra.mxu0 0.0
    %251 = vmatprep.subr.mxu0 0.0
    %252 = vmatpush1.msra.mxu0 0.0
    %253 = vmatprep.subr.mxu0 0.0
    %254 = vmatpush1.msra.mxu0 0.0
    %255 = vmatprep.subr.mxu0 0.0
    %256 = vmatpush1.msra.mxu0 0.0
    %257 = vmatprep.subr.mxu0 0.0
    %258 = vmatpush1.msra.mxu0 0.0
    %259 = vmatprep.subr.mxu0 0.0
    %260 = vmatpush1.msra.mxu0 0.0
    %261 = vmatprep.subr.mxu0 0.0
    %262 = vmatpush1.msra.mxu0 0.0
    %263 = vmatprep.subr.mxu0 0.0
    %264 = vmatpush1.msra.mxu0 0.0
    %265 = vmatprep.mubr.f32.mxu0 0.0
    %266 = vmatmul.mubr.f32.gmra.mrb[0].mxu0 %v176
    %v267 = vpop.f32.mrb[0].mxu0
    %v268 = vadd.f32 %v199, %v267
    %v269 = vpop.f32.mrb[0].mxu0
    %270 = vmatprep.mubr.f32.mxu0 0.0
    %271 = vmatmul.mubr.f32.gmra.mrb[0].mxu0 %v177
    %v272 = vpop.f32.mrb[0].mxu0
    %v273 = vadd.f32 %v199, %v272
    %v274 = vpop.f32.mrb[0].mxu0
    %275 = vdwg.mxu0
    %v276 = vmax.f32 %v268, 0.0
    %v277 = vmax.f32 %v273, 0.0
    %v278 = vld [vmem:[#allocation7] sm:$0xff]
    %v279 = vld [vmem:[#allocation7 + $0x8] sm:$0xff]
    %v280 = vld [vmem:[#allocation7 + $0x10] sm:$0xff]
    %v281 = vld [vmem:[#allocation7 + $0x18] sm:$0xff]
    %v282 = vld [vmem:[#allocation7 + $0x20] sm:$0xff]
    %v283 = vld [vmem:[#allocation7 + $0x28] sm:$0xff]
    %v284 = vld [vmem:[#allocation7 + $0x30] sm:$0xff]
    %v285 = vld [vmem:[#allocation7 + $0x38] sm:$0xff]
    %v286 = vld [vmem:[#allocation7 + $0x40] sm:$0xff]
    %v287 = vld [vmem:[#allocation7 + $0x48] sm:$0xff]
    %v288 = vld [vmem:[#allocation7 + $0x50] sm:$0xff]
    %v289 = vld [vmem:[#allocation7 + $0x58] sm:$0xff]
    %v290 = vld [vmem:[#allocation7 + $0x60] sm:$0xff]
    %v291 = vld [vmem:[#allocation7 + $0x68] sm:$0xff]
    %v292 = vld [vmem:[#allocation7 + $0x70] sm:$0xff]
    %v293 = vld [vmem:[#allocation7 + $0x78] sm:$0xff]
    %v294 = vld [vmem:[#allocation7 + $0x80] sm:$0xff]
    %v295 = vld [vmem:[#allocation7 + $0x88] sm:$0xff]
    %v296 = vld [vmem:[#allocation7 + $0x90] sm:$0xff]
    %v297 = vld [vmem:[#allocation7 + $0x98] sm:$0xff]
    %v298 = vld [vmem:[#allocation7 + $0xa0] sm:$0xff]
    %v299 = vld [vmem:[#allocation7 + $0xa8] sm:$0xff]
    %v300 = vld [vmem:[#allocation7 + $0xb0] sm:$0xff]
    %v301 = vld [vmem:[#allocation7 + $0xb8] sm:$0xff]
    %v302 = vld [vmem:[#allocation7 + $0xc0] sm:$0xff]
    %v303 = vld [vmem:[#allocation7 + $0xc8] sm:$0xff]
    %v304 = vld [vmem:[#allocation7 + $0xd0] sm:$0xff]
    %v305 = vld [vmem:[#allocation7 + $0xd8] sm:$0xff]
    %v306 = vld [vmem:[#allocation7 + $0xe0] sm:$0xff]
    %v307 = vld [vmem:[#allocation7 + $0xe8] sm:$0xff]
    %v308 = vld [vmem:[#allocation7 + $0xf0] sm:$0xff]
    %v309 = vld [vmem:[#allocation7 + $0xf8] sm:$0xff]
    %v310 = vld [vmem:[%s6] sm:$0x3]
    %v312 = vlaneseq
    %v313 = vshrl.u32 %v312, 7
    %v314 = vsub.s32 0, %v313
    %v315 = vrot.slane %v310, %v314
    %v316 = vlaneseq
    %v317 = vshrl.u32 %v316, 7
    %v318 = vsub.s32 1, %v317
    %v319 = vrot.slane %v310, %v318
    %322 = vmatprep.subr.mxu0 %v279
    %323 = vmatpush1.msra.mxu0 %v278
    %324 = vmatprep.subr.mxu0 %v281
    %325 = vmatpush1.msra.mxu0 %v280
    %326 = vmatprep.subr.mxu0 %v283
    %327 = vmatpush1.msra.mxu0 %v282
    %328 = vmatprep.subr.mxu0 %v285
    %329 = vmatpush1.msra.mxu0 %v284
    %330 = vmatprep.subr.mxu0 %v287
    %331 = vmatpush1.msra.mxu0 %v286
    %332 = vmatprep.subr.mxu0 %v289
    %333 = vmatpush1.msra.mxu0 %v288
    %334 = vmatprep.subr.mxu0 %v291
    %335 = vmatpush1.msra.mxu0 %v290
    %336 = vmatprep.subr.mxu0 %v293
    %337 = vmatpush1.msra.mxu0 %v292
    %338 = vmatprep.subr.mxu0 %v295
    %339 = vmatpush1.msra.mxu0 %v294
    %340 = vmatprep.subr.mxu0 %v297
    %341 = vmatpush1.msra.mxu0 %v296
    %342 = vmatprep.subr.mxu0 %v299
    %343 = vmatpush1.msra.mxu0 %v298
    %344 = vmatprep.subr.mxu0 %v301
    %345 = vmatpush1.msra.mxu0 %v300
    %346 = vmatprep.subr.mxu0 %v303
    %347 = vmatpush1.msra.mxu0 %v302
    %348 = vmatprep.subr.mxu0 %v305
    %349 = vmatpush1.msra.mxu0 %v304
    %350 = vmatprep.subr.mxu0 %v307
    %351 = vmatpush1.msra.mxu0 %v306
    %352 = vmatprep.subr.mxu0 %v309
    %353 = vmatpush1.msra.mxu0 %v308
    %354 = vmatprep.subr.mxu0 0.0
    %355 = vmatpush1.msra.mxu0 0.0
    %356 = vmatprep.subr.mxu0 0.0
    %357 = vmatpush1.msra.mxu0 0.0
    %358 = vmatprep.subr.mxu0 0.0
    %359 = vmatpush1.msra.mxu0 0.0
    %360 = vmatprep.subr.mxu0 0.0
    %361 = vmatpush1.msra.mxu0 0.0
    %362 = vmatprep.subr.mxu0 0.0
    %363 = vmatpush1.msra.mxu0 0.0
    %364 = vmatprep.subr.mxu0 0.0
    %365 = vmatpush1.msra.mxu0 0.0
    %366 = vmatprep.subr.mxu0 0.0
    %367 = vmatpush1.msra.mxu0 0.0
    %368 = vmatprep.subr.mxu0 0.0
    %369 = vmatpush1.msra.mxu0 0.0
    %370 = vmatprep.subr.mxu0 0.0
    %371 = vmatpush1.msra.mxu0 0.0
    %372 = vmatprep.subr.mxu0 0.0
    %373 = vmatpush1.msra.mxu0 0.0
    %374 = vmatprep.subr.mxu0 0.0
    %375 = vmatpush1.msra.mxu0 0.0
    %376 = vmatprep.subr.mxu0 0.0
    %377 = vmatpush1.msra.mxu0 0.0
    %378 = vmatprep.subr.mxu0 0.0
    %379 = vmatpush1.msra.mxu0 0.0
    %380 = vmatprep.subr.mxu0 0.0
    %381 = vmatpush1.msra.mxu0 0.0
    %382 = vmatprep.subr.mxu0 0.0
    %383 = vmatpush1.msra.mxu0 0.0
    %384 = vmatprep.subr.mxu0 0.0
    %385 = vmatpush1.msra.mxu0 0.0
    %386 = vmatprep.mubr.f32.mxu0 0.0
    %387 = vmatmul.mubr.f32.gmra.mrb[0].mxu0 %v276
    %v388 = vpop.f32.mrb[0].mxu0
    %v389 = vadd.f32 %v315, %v388
    %v390 = vpop.f32.mrb[0].mxu0
    %v391 = vadd.f32 %v319, %v390
    %392 = vmatprep.mubr.f32.mxu0 0.0
    %393 = vmatmul.mubr.f32.gmra.mrb[0].mxu0 %v277
    %v394 = vpop.f32.mrb[0].mxu0
    %v395 = vadd.f32 %v315, %v394
    %v396 = vpop.f32.mrb[0].mxu0
    %v397 = vadd.f32 %v319, %v396
    %398 = vdwg.mxu0
    %399 = vst [vmem:[%s7] sm:$0xff] %v389
    %400 = vst [vmem:[%s7 + $0x8] sm:$0xff] %v391
    %401 = vst [vmem:[%s7 + $0x10] sm:$0xff] %v395
    %402 = vst [vmem:[%s7 + $0x18] sm:$0xff] %v397
    // Predicated region
    $region46: #{encoder_forward.1} parent=1 // pred_check
      _
    $region47: #{encoder_forward.1} parent=1 // pred_check_branch
      %404 = sbr.rel (0) target = $region49
    $region48: #{encoder_forward.1} parent=1 // pred_region
      _
    $region49: #{encoder_forward.1} parent=1 // pred_fallthru
      _
    // Predicated region
    $region50: #{encoder_forward.1} parent=1 // pred_check
      _
    $region51: #{encoder_forward.1} parent=1 // pred_check_branch
      %406 = sbr.rel (0) target = $region53
    $region52: #{encoder_forward.1} parent=1 // pred_region
      _
    $region53: #{encoder_forward.1} parent=1 // pred_fallthru
      _
    %407 = vsyncpa [#allocation3], 1
    %408 = vsyncpa [#allocation5], 1
    %409 = vsyncpa [#allocation8], 1

</llo_original>
